<compile_context>
chip_gen: v6e
topology: v6e:2x2x1
jax: 0.10.0
libtpu: 0.0.40
codegen_flags: <defaults>
</compile_context>

<pallas_src>
import math

import jax
import jax.numpy as jnp
from jax import lax
from jax.experimental import pallas as pl
from jax.experimental.pallas import tpu as pltpu

_EPS = 1e-5  # nn.LayerNorm default eps


def _mamba_kernel(x_ref, gamma_ref, beta_ref,
                  wf_ref, bf_ref,          # fused input_proj + gate:   (D, 2H), (1, 2H)
                  wc_ref, bc_ref,          # depthwise conv1d:          (K, H), (1, H)
                  wo_ref, bo_ref,          # output_proj:               (H, D), (1, D)
                  o_ref):
    x = x_ref[0]                                            # (L, D)
    L = x.shape[0]
    ksize, hidden = wc_ref.shape
    pad = ksize // 2

    # --- LayerNorm over the channel dim (biased variance, affine) ----------
    mean = jnp.mean(x, axis=-1, keepdims=True)              # (L, 1)
    var = jnp.mean((x - mean) ** 2, axis=-1, keepdims=True)
    xn = (x - mean) * lax.rsqrt(var + _EPS)
    xn = xn * gamma_ref[...] + beta_ref[...]                # (L, D)

    # --- fused projection: [input_proj | gate] in one lane-dense matmul ----
    proj = jnp.dot(xn, wf_ref[...],
                   preferred_element_type=jnp.float32) + bf_ref[...]   # (L, 2H)
    u = proj[:, :hidden]                                    # (L, H)
    gate = jax.nn.sigmoid(proj[:, hidden:])                 # (L, H)

    # --- depthwise conv1d along L ('same' zero padding, cross-correlation) -
    wc = wc_ref[...]                                        # (K, H)
    zpad = jnp.zeros((pad, hidden), u.dtype)
    up = jnp.concatenate([zpad, u, zpad], axis=0)           # (L + 2*pad, H)
    conv = jnp.zeros_like(u)
    for k in range(ksize):                                  # static, tiny K
        conv = conv + up[k:k + L, :] * wc[k:k + 1, :]
    conv = conv + bc_ref[...]                               # (L, H)

    # --- gate, output projection, residual ---------------------------------
    y = conv * gate                                         # (L, H)
    out = jnp.dot(y, wo_ref[...],
                  preferred_element_type=jnp.float32) + bo_ref[...] + x
    o_ref[0] = out


def simple_mamba_pallas(x, params):
    """x: (B, L, D) float32.  params: packed tuple from init_params."""
    (gamma, beta, w_fused, b_fused, w_conv, b_conv, w_out, b_out) = params
    B, L, D = x.shape
    K, H = w_conv.shape

    bcast = lambda shape: pl.BlockSpec(shape, lambda b: (0,) * len(shape))
    in_specs = [
        pl.BlockSpec((1, L, D), lambda b: (b, 0, 0)),   # x
        bcast((1, D)), bcast((1, D)),                   # gamma, beta
        bcast((D, 2 * H)), bcast((1, 2 * H)),           # fused proj W, b
        bcast((K, H)), bcast((1, H)),                   # conv W, b
        bcast((H, D)), bcast((1, D)),                   # out proj W, b
    ]

    flops = B * (2 * L * D * 2 * H      # fused projection matmul
                 + 2 * L * H * D        # output projection matmul
                 + 2 * L * H * K        # depthwise conv
                 + 8 * L * H + 6 * L * D)
    bytes_accessed = 4 * (2 * B * L * D                      # x in + out
                          + D * 2 * H + 2 * H                # fused proj
                          + K * H + H + H * D + D + 2 * D)   # conv / out / LN

    out = pl.pallas_call(
        _mamba_kernel,
        out_shape=jax.ShapeDtypeStruct((B, L, D), jnp.float32),
        grid=(B,),
        in_specs=in_specs,
        out_specs=pl.BlockSpec((1, L, D), lambda b: (b, 0, 0)),
        compiler_params=pltpu.CompilerParams(
            dimension_semantics=("parallel",),
            vmem_limit_bytes=64 << 20),
        cost_estimate=pl.CostEstimate(
            flops=flops,
            transcendentals=B * L * H,       # sigmoid
            bytes_accessed=bytes_accessed),
    )(x, gamma, beta, w_fused, b_fused, w_conv, b_conv, w_out, b_out)
    return out


def simple_mamba_ref(x, params):
    """Independent pure-JAX reference (uses lax.conv for the depthwise conv)."""
    (gamma, beta, w_fused, b_fused, w_conv, b_conv, w_out, b_out) = params
    B, L, D = x.shape
    K, H = w_conv.shape
    mean = jnp.mean(x, axis=-1, keepdims=True)
    var = jnp.mean((x - mean) ** 2, axis=-1, keepdims=True)
    xn = (x - mean) / jnp.sqrt(var + _EPS) * gamma + beta
    proj = xn @ w_fused + b_fused
    u = proj[..., :H]
    gate = jax.nn.sigmoid(proj[..., H:])
    u_t = jnp.transpose(u, (0, 2, 1))                        # (B, H, L)
    w_t = jnp.transpose(w_conv, (1, 0))[:, None, :]          # (H, 1, K)
    conv = lax.conv_general_dilated(
        u_t, w_t, window_strides=(1,), padding=[(K // 2, K // 2)],
        dimension_numbers=("NCH", "OIH", "NCH"), feature_group_count=H)
    conv = conv + b_conv.reshape(1, H, 1)
    conv = jnp.transpose(conv, (0, 2, 1))                    # (B, L, H)
    y = conv * gate
    return y @ w_out + b_out + x


def init_params(key, dim, hidden, ksize):
    """PyTorch-default-style init, packed for the kernel.

    Returns: gamma(1,D), beta(1,D), w_fused(D,2H), b_fused(1,2H),
             w_conv(K,H), b_conv(1,H), w_out(H,D), b_out(1,D)
    """
    ks = jax.random.split(key, 10)
    bl = 1.0 / math.sqrt(dim)
    w_in = jax.random.uniform(ks[0], (hidden, dim), jnp.float32, -bl, bl)
    b_in = jax.random.uniform(ks[1], (hidden,), jnp.float32, -bl, bl)
    w_gate = jax.random.uniform(ks[2], (hidden, dim), jnp.float32, -bl, bl)
    b_gate = jax.random.uniform(ks[3], (hidden,), jnp.float32, -bl, bl)
    bc = 1.0 / math.sqrt(ksize)          # depthwise: fan_in = 1 * ksize
    w_conv = jax.random.uniform(ks[4], (hidden, 1, ksize), jnp.float32, -bc, bc)
    b_conv = jax.random.uniform(ks[5], (hidden,), jnp.float32, -bc, bc)
    bo = 1.0 / math.sqrt(hidden)
    w_out = jax.random.uniform(ks[6], (dim, hidden), jnp.float32, -bo, bo)
    b_out = jax.random.uniform(ks[7], (dim,), jnp.float32, -bo, bo)
    gamma = jax.random.uniform(ks[8], (dim,), jnp.float32, 0.5, 1.5)
    beta = jax.random.uniform(ks[9], (dim,), jnp.float32, -0.5, 0.5)

    # Pack: fuse input_proj & gate along the output dim, conv weight -> (K, H).
    w_fused = jnp.concatenate([w_in.T, w_gate.T], axis=1)            # (D, 2H)
    b_fused = jnp.concatenate([b_in, b_gate]).reshape(1, 2 * hidden)
    w_conv_k = jnp.transpose(w_conv[:, 0, :], (1, 0))                # (K, H)
    return (gamma.reshape(1, dim), beta.reshape(1, dim),
            w_fused, b_fused,
            w_conv_k, b_conv.reshape(1, hidden),
            w_out.T, b_out.reshape(1, dim))


if __name__ == "__main__":
    key = jax.random.PRNGKey(0)
    B, L, D, H, K = 2, 16, 32, 64, 3     # (batch, seq_len, dim, hidden_dim, kernel)
    x = jax.random.normal(jax.random.fold_in(key, 42), (B, L, D), jnp.float32)
    params = init_params(key, D, H, K)

    y = simple_mamba_pallas(x, params)
    jax.block_until_ready(y)

    y_ref = simple_mamba_ref(x, params)
    err = float(jnp.max(jnp.abs(y - y_ref)))
    assert jnp.allclose(y, y_ref, atol=1e-4, rtol=1e-4), f"max abs err {err}"
    print("KERNEL_OK")
</pallas_src>

<mosaic_0001>
module attributes {stable_mosaic.version = 11 : i64} {
  func.func @_mamba_kernel(%arg0: i32, %arg1: memref<1x16x32xf32, #tpu.memory_space<vmem>>, %arg2: memref<1x32xf32, #tpu.memory_space<vmem>>, %arg3: memref<1x32xf32, #tpu.memory_space<vmem>>, %arg4: memref<32x128xf32, #tpu.memory_space<vmem>>, %arg5: memref<1x128xf32, #tpu.memory_space<vmem>>, %arg6: memref<3x64xf32, #tpu.memory_space<vmem>>, %arg7: memref<1x64xf32, #tpu.memory_space<vmem>>, %arg8: memref<64x32xf32, #tpu.memory_space<vmem>>, %arg9: memref<1x32xf32, #tpu.memory_space<vmem>>, %arg10: memref<1x16x32xf32, #tpu.memory_space<vmem>>) attributes {dimension_semantics = [#tpu.dimension_semantics<parallel>], iteration_bounds = array<i64: 2>, scalar_prefetch = 0 : i64, scratch_operands = 0 : i64, tpu.core_type = #tpu.core_type<tc>, window_params = [{transform_indices = @transform_0, window_bounds = array<i64: 1, 16, 32>}, {pipeline_mode = #tpu.pipeline_mode<synchronous>, transform_indices = @transform_1, window_bounds = array<i64: 1, 32>}, {pipeline_mode = #tpu.pipeline_mode<synchronous>, transform_indices = @transform_2, window_bounds = array<i64: 1, 32>}, {pipeline_mode = #tpu.pipeline_mode<synchronous>, transform_indices = @transform_3, window_bounds = array<i64: 32, 128>}, {pipeline_mode = #tpu.pipeline_mode<synchronous>, transform_indices = @transform_4, window_bounds = array<i64: 1, 128>}, {pipeline_mode = #tpu.pipeline_mode<synchronous>, transform_indices = @transform_5, window_bounds = array<i64: 3, 64>}, {pipeline_mode = #tpu.pipeline_mode<synchronous>, transform_indices = @transform_6, window_bounds = array<i64: 1, 64>}, {pipeline_mode = #tpu.pipeline_mode<synchronous>, transform_indices = @transform_7, window_bounds = array<i64: 64, 32>}, {pipeline_mode = #tpu.pipeline_mode<synchronous>, transform_indices = @transform_8, window_bounds = array<i64: 1, 32>}, {transform_indices = @transform_9, window_bounds = array<i64: 1, 16, 32>}]} {
    %c0 = arith.constant 0 : index
    %c0_0 = arith.constant 0 : index
    %c0_1 = arith.constant 0 : index
    %0 = vector.load %arg1[%c0, %c0_0, %c0_1] : memref<1x16x32xf32, #tpu.memory_space<vmem>>, vector<1x16x32xf32>
    %1 = vector.shape_cast %0 : vector<1x16x32xf32> to vector<16x32xf32>
    %cst = arith.constant dense<0.000000e+00> : vector<16xf32>
    %2 = vector.multi_reduction <add>, %1, %cst [1] : vector<16x32xf32> to vector<16xf32>
    %3 = vector.shape_cast %2 : vector<16xf32> to vector<16x1xf32>
    %cst_2 = arith.constant 3.200000e+01 : f32
    %4 = vector.broadcast %cst_2 : f32 to vector<16x1xf32>
    %5 = arith.divf %3, %4 : vector<16x1xf32>
    %6 = vector.broadcast %5 : vector<16x1xf32> to vector<16x32xf32>
    %7 = arith.subf %1, %6 : vector<16x32xf32>
    %8 = arith.mulf %7, %7 : vector<16x32xf32>
    %cst_3 = arith.constant dense<0.000000e+00> : vector<16xf32>
    %9 = vector.multi_reduction <add>, %8, %cst_3 [1] : vector<16x32xf32> to vector<16xf32>
    %10 = vector.shape_cast %9 : vector<16xf32> to vector<16x1xf32>
    %cst_4 = arith.constant 3.200000e+01 : f32
    %11 = vector.broadcast %cst_4 : f32 to vector<16x1xf32>
    %12 = arith.divf %10, %11 : vector<16x1xf32>
    %13 = vector.broadcast %5 : vector<16x1xf32> to vector<16x32xf32>
    %14 = arith.subf %1, %13 : vector<16x32xf32>
    %cst_5 = arith.constant 9.99999974E-6 : f32
    %15 = vector.broadcast %cst_5 : f32 to vector<16x1xf32>
    %16 = arith.addf %12, %15 : vector<16x1xf32>
    %17 = math.rsqrt %16 : vector<16x1xf32>
    %18 = vector.broadcast %17 : vector<16x1xf32> to vector<16x32xf32>
    %19 = arith.mulf %14, %18 : vector<16x32xf32>
    %c0_6 = arith.constant 0 : index
    %c0_7 = arith.constant 0 : index
    %20 = vector.load %arg2[%c0_6, %c0_7] : memref<1x32xf32, #tpu.memory_space<vmem>>, vector<1x32xf32>
    %21 = vector.broadcast %20 : vector<1x32xf32> to vector<16x32xf32>
    %22 = arith.mulf %19, %21 : vector<16x32xf32>
    %c0_8 = arith.constant 0 : index
    %c0_9 = arith.constant 0 : index
    %23 = vector.load %arg3[%c0_8, %c0_9] : memref<1x32xf32, #tpu.memory_space<vmem>>, vector<1x32xf32>
    %24 = vector.broadcast %23 : vector<1x32xf32> to vector<16x32xf32>
    %25 = arith.addf %22, %24 : vector<16x32xf32>
    %c0_10 = arith.constant 0 : index
    %c0_11 = arith.constant 0 : index
    %26 = vector.load %arg4[%c0_10, %c0_11] : memref<32x128xf32, #tpu.memory_space<vmem>>, vector<32x128xf32>
    %cst_12 = arith.constant dense<0.000000e+00> : vector<16x128xf32>
    %27 = tpu.matmul %25, %26, %cst_12 {dimension_numbers = #tpu.dot_dimension_numbers<[1], [0], [0], [1], [0, 0, 1, 1], [], []>} : vector<16x32xf32>, vector<32x128xf32>, vector<16x128xf32> -> vector<16x128xf32>
    %c0_13 = arith.constant 0 : index
    %c0_14 = arith.constant 0 : index
    %28 = vector.load %arg5[%c0_13, %c0_14] : memref<1x128xf32, #tpu.memory_space<vmem>>, vector<1x128xf32>
    %29 = vector.broadcast %28 : vector<1x128xf32> to vector<16x128xf32>
    %30 = arith.addf %27, %29 : vector<16x128xf32>
    %31 = vector.extract_strided_slice %30 {offsets = [0, 0], sizes = [16, 64], strides = [1, 1]} : vector<16x128xf32> to vector<16x64xf32>
    %32 = vector.extract_strided_slice %30 {offsets = [0, 64], sizes = [16, 64], strides = [1, 1]} : vector<16x128xf32> to vector<16x64xf32>
    %33 = arith.negf %32 : vector<16x64xf32>
    %34 = math.exp %33 : vector<16x64xf32>
    %cst_15 = arith.constant 1.000000e+00 : f32
    %35 = vector.broadcast %cst_15 : f32 to vector<16x64xf32>
    %36 = arith.addf %35, %34 : vector<16x64xf32>
    %37 = arith.divf %35, %36 : vector<16x64xf32>
    %c0_16 = arith.constant 0 : index
    %c0_17 = arith.constant 0 : index
    %38 = vector.load %arg6[%c0_16, %c0_17] : memref<3x64xf32, #tpu.memory_space<vmem>>, vector<3x64xf32>
    %cst_18 = arith.constant 0.000000e+00 : f32
    %39 = vector.broadcast %cst_18 : f32 to vector<1x64xf32>
    %40 = tpu.concatenate %39, %31, %39 in 0 : vector<1x64xf32>, vector<16x64xf32>, vector<1x64xf32> -> vector<18x64xf32>
    %cst_19 = arith.constant 0.000000e+00 : f32
    %41 = vector.broadcast %cst_19 : f32 to vector<16x64xf32>
    %42 = vector.extract_strided_slice %40 {offsets = [0, 0], sizes = [16, 64], strides = [1, 1]} : vector<18x64xf32> to vector<16x64xf32>
    %43 = vector.extract_strided_slice %38 {offsets = [0, 0], sizes = [1, 64], strides = [1, 1]} : vector<3x64xf32> to vector<1x64xf32>
    %44 = vector.broadcast %43 : vector<1x64xf32> to vector<16x64xf32>
    %45 = arith.mulf %42, %44 : vector<16x64xf32>
    %46 = arith.addf %41, %45 : vector<16x64xf32>
    %47 = vector.extract_strided_slice %40 {offsets = [1, 0], sizes = [16, 64], strides = [1, 1]} : vector<18x64xf32> to vector<16x64xf32>
    %48 = vector.extract_strided_slice %38 {offsets = [1, 0], sizes = [1, 64], strides = [1, 1]} : vector<3x64xf32> to vector<1x64xf32>
    %49 = vector.broadcast %48 : vector<1x64xf32> to vector<16x64xf32>
    %50 = arith.mulf %47, %49 : vector<16x64xf32>
    %51 = arith.addf %46, %50 : vector<16x64xf32>
    %52 = vector.extract_strided_slice %40 {offsets = [2, 0], sizes = [16, 64], strides = [1, 1]} : vector<18x64xf32> to vector<16x64xf32>
    %53 = vector.extract_strided_slice %38 {offsets = [2, 0], sizes = [1, 64], strides = [1, 1]} : vector<3x64xf32> to vector<1x64xf32>
    %54 = vector.broadcast %53 : vector<1x64xf32> to vector<16x64xf32>
    %55 = arith.mulf %52, %54 : vector<16x64xf32>
    %56 = arith.addf %51, %55 : vector<16x64xf32>
    %c0_20 = arith.constant 0 : index
    %c0_21 = arith.constant 0 : index
    %57 = vector.load %arg7[%c0_20, %c0_21] : memref<1x64xf32, #tpu.memory_space<vmem>>, vector<1x64xf32>
    %58 = vector.broadcast %57 : vector<1x64xf32> to vector<16x64xf32>
    %59 = arith.addf %56, %58 : vector<16x64xf32>
    %60 = arith.mulf %59, %37 : vector<16x64xf32>
    %c0_22 = arith.constant 0 : index
    %c0_23 = arith.constant 0 : index
    %61 = vector.load %arg8[%c0_22, %c0_23] : memref<64x32xf32, #tpu.memory_space<vmem>>, vector<64x32xf32>
    %cst_24 = arith.constant dense<0.000000e+00> : vector<16x32xf32>
    %62 = tpu.matmul %60, %61, %cst_24 {dimension_numbers = #tpu.dot_dimension_numbers<[1], [0], [0], [1], [0, 0, 1, 1], [], []>} : vector<16x64xf32>, vector<64x32xf32>, vector<16x32xf32> -> vector<16x32xf32>
    %c0_25 = arith.constant 0 : index
    %c0_26 = arith.constant 0 : index
    %63 = vector.load %arg9[%c0_25, %c0_26] : memref<1x32xf32, #tpu.memory_space<vmem>>, vector<1x32xf32>
    %64 = vector.broadcast %63 : vector<1x32xf32> to vector<16x32xf32>
    %65 = arith.addf %62, %64 : vector<16x32xf32>
    %66 = arith.addf %65, %1 : vector<16x32xf32>
    %c0_27 = arith.constant 0 : index
    %c0_28 = arith.constant 0 : index
    %c0_29 = arith.constant 0 : index
    %67 = vector.load %arg10[%c0_27, %c0_28, %c0_29] : memref<1x16x32xf32, #tpu.memory_space<vmem>>, vector<1x16x32xf32>
    %68 = vector.shape_cast %67 : vector<1x16x32xf32> to vector<16x32xf32>
    %69 = vector.shape_cast %66 : vector<16x32xf32> to vector<1x16x32xf32>
    tpu.vector_store %arg10[%c0_27, %c0_28, %c0_29], %69 {strides = array<i32>} : memref<1x16x32xf32, #tpu.memory_space<vmem>>, vector<1x16x32xf32>,
    return
  }
  func.func @transform_0(%arg0: i32) -> (i32, i32, i32) {
    %c0_i32 = arith.constant 0 : i32
    %c0_i32_0 = arith.constant 0 : i32
    %c0_i32_1 = arith.constant 0 : i32
    return %arg0, %c0_i32, %c0_i32_0 : i32, i32, i32
  }
  func.func @transform_1(%arg0: i32) -> (i32, i32) {
    %c0_i32 = arith.constant 0 : i32
    %c0_i32_0 = arith.constant 0 : i32
    %c0_i32_1 = arith.constant 0 : i32
    return %c0_i32, %c0_i32_0 : i32, i32
  }
  func.func @transform_2(%arg0: i32) -> (i32, i32) {
    %c0_i32 = arith.constant 0 : i32
    %c0_i32_0 = arith.constant 0 : i32
    %c0_i32_1 = arith.constant 0 : i32
    return %c0_i32, %c0_i32_0 : i32, i32
  }
  func.func @transform_3(%arg0: i32) -> (i32, i32) {
    %c0_i32 = arith.constant 0 : i32
    %c0_i32_0 = arith.constant 0 : i32
    %c0_i32_1 = arith.constant 0 : i32
    return %c0_i32, %c0_i32_0 : i32, i32
  }
  func.func @transform_4(%arg0: i32) -> (i32, i32) {
    %c0_i32 = arith.constant 0 : i32
    %c0_i32_0 = arith.constant 0 : i32
    %c0_i32_1 = arith.constant 0 : i32
    return %c0_i32, %c0_i32_0 : i32, i32
  }
  func.func @transform_5(%arg0: i32) -> (i32, i32) {
    %c0_i32 = arith.constant 0 : i32
    %c0_i32_0 = arith.constant 0 : i32
    %c0_i32_1 = arith.constant 0 : i32
    return %c0_i32, %c0_i32_0 : i32, i32
  }
  func.func @transform_6(%arg0: i32) -> (i32, i32) {
    %c0_i32 = arith.constant 0 : i32
    %c0_i32_0 = arith.constant 0 : i32
    %c0_i32_1 = arith.constant 0 : i32
    return %c0_i32, %c0_i32_0 : i32, i32
  }
  func.func @transform_7(%arg0: i32) -> (i32, i32) {
    %c0_i32 = arith.constant 0 : i32
    %c0_i32_0 = arith.constant 0 : i32
    %c0_i32_1 = arith.constant 0 : i32
    return %c0_i32, %c0_i32_0 : i32, i32
  }
  func.func @transform_8(%arg0: i32) -> (i32, i32) {
    %c0_i32 = arith.constant 0 : i32
    %c0_i32_0 = arith.constant 0 : i32
    %c0_i32_1 = arith.constant 0 : i32
    return %c0_i32, %c0_i32_0 : i32, i32
  }
  func.func @transform_9(%arg0: i32) -> (i32, i32, i32) {
    %c0_i32 = arith.constant 0 : i32
    %c0_i32_0 = arith.constant 0 : i32
    %c0_i32_1 = arith.constant 0 : i32
    return %arg0, %c0_i32, %c0_i32_0 : i32, i32, i32
  }
}

</mosaic_0001>

<llo_original>
// kernel: tpu_custom_call.1
$region0: #{tpu_custom_call.1}
  #allocation0 [shape = 'u32[]', space=smem, size = 0x4, offset = 0x4, fixed_abs, tag = 'smem constant byte address 0x4 - core index']
  #allocation1 [shape = 'u32[144,128]{1,0:T(1,128)}', space=vmem, size = 0x12000, scoped, tag = 'internal scratch']
  %s0 = inlined_call_operand.vmem [shape: f32[2,16,32], index: 0, kind: input, shape index: {}]
  %s1 = inlined_call_operand.vmem [shape: f32[1,32], index: 1, kind: input, shape index: {}]
  %s2 = inlined_call_operand.vmem [shape: f32[1,32], index: 2, kind: input, shape index: {}]
  %s3 = inlined_call_operand.vmem [shape: f32[32,128], index: 3, kind: input, shape index: {}]
  %s4 = inlined_call_operand.vmem [shape: f32[1,128], index: 4, kind: input, shape index: {}]
  %s5 = inlined_call_operand.vmem [shape: f32[3,64], index: 5, kind: input, shape index: {}]
  %s6 = inlined_call_operand.vmem [shape: f32[1,64], index: 6, kind: input, shape index: {}]
  %s7 = inlined_call_operand.vmem [shape: f32[64,32], index: 7, kind: input, shape index: {}]
  %s8 = inlined_call_operand.vmem [shape: f32[1,32], index: 8, kind: input, shape index: {}]
  %s9 = inlined_call_operand.hbm [shape: f32[2,16,32], index: 9, kind: output, shape index: {}]
  %s10 = sld [smem:[#allocation0]]
  $region69: #{tpu_custom_call.1} parent=0
    _
  %s12 = ssub.s32 1, %s10
  %s13 = scalar_select 0, %s12, %s10
  $region1: #{tpu_custom_call.1} parent=0
    #allocation2 [shape = 'u8[16384]{0}', space=vmem, size = 0x4000, scoped, tag = 'output window, operand 0']
    #allocation3 [shape = 's32[2]{0}', space=sflag, size = 0x8, scoped, tag = 'scoped memory for tpu_custom_call.1']
    %14 = vsyncpa [#allocation3], 0
    %s15 = scalar_lea.sflag [#allocation3], 1
    %16 = vsyncpa %s15, 0
    loop: start=0, step=1, limit=4
    $region2: #{tpu_custom_call.1} parent=1 // loop_pre_header
      _
    $region3: #{tpu_custom_call.1} parent=1 // loop_header
      %s18 = sphi 0, %s22
      %p19 = scmp.ge.s32.totalorder %s18, 4
      %s28 = sphi 0, %s30
      %s31 = sphi 0, %s28
      %s32 = sphi 0, %s31
      %s48 = sphi 0, %s32
      %s52 = sphi 0, %s52
      %s54 = sphi 0, %s52
      %s55 = sphi 0, %s54
      %s69 = sphi 0, %s55
      %s73 = sphi 0, %s73
      %s75 = sphi 0, %s73
      %s76 = sphi 0, %s75
      %s90 = sphi 0, %s76
      %s94 = sphi 0, %s94
      %s96 = sphi 0, %s94
      %s97 = sphi 0, %s96
      %s111 = sphi 0, %s97
      %s115 = sphi 0, %s115
      %s117 = sphi 0, %s115
      %s118 = sphi 0, %s117
      %s132 = sphi 0, %s118
      %s136 = sphi 0, %s136
      %s138 = sphi 0, %s136
      %s139 = sphi 0, %s138
      %s153 = sphi 0, %s139
      %s157 = sphi 0, %s157
      %s159 = sphi 0, %s157
      %s160 = sphi 0, %s159
      %s174 = sphi 0, %s160
      %s178 = sphi 0, %s178
      %s180 = sphi 0, %s178
      %s181 = sphi 0, %s180
      %s195 = sphi 0, %s181
      %s199 = sphi 0, %s199
      %s201 = sphi 0, %s199
      %s202 = sphi 0, %s201
      %s216 = sphi 0, %s202
      %s222 = sphi 0, %s224
      %s225 = sphi 0, %s222
      %s226 = sphi 0, %s225
      %s242 = sphi 0, %s226
    $region4: #{tpu_custom_call.1} parent=1 // loop_header_branch
      %21 = sbr.rel (%p19) target = $region8
    $region5: #{tpu_custom_call.1} parent=1 // loop_body
      %s23 = ssub.s32 %s18, 1
      %s24 = ssub.s32 %s18, 2
      %s25 = sadd.s32 %s18, 1
      %s26 = ssub.s32 %s18, %s25
      %p27 = scmp.eq.s32.totalorder %s26, 0
      %s29 = sadd.s32 %s28, 1
      %s30 = scalar_select %p27, %s28, %s29
      %p33 = pneg %p27
      %p34 = scmp.eq.s32.totalorder %s18, 1
      %p35 = por %p33, %p34
      %p36 = scmp.ne.s32.totalorder %s28, %s31
      %p37 = scmp.eq.s32.totalorder %s18, 0
      %p38 = por %p36, %p37
      %p39 = scmp.ne.s32.totalorder %s28, %s31
      %p40 = scmp.eq.s32.totalorder %s23, 1
      %p41 = por %p39, %p40
      %p42 = scmp.ne.s32.totalorder %s31, %s32
      %p43 = scmp.eq.s32.totalorder %s23, 0
      %p44 = por %p42, %p43
      %p45 = scmp.ne.s32.totalorder %s31, %s32
      %p46 = scmp.eq.s32.totalorder %s24, 1
      %p47 = por %p45, %p46
      %p49 = scmp.ne.s32.totalorder %s32, %s48
      %p50 = scmp.eq.s32.totalorder %s24, 0
      %p51 = por %p49, %p50
      %s53 = sadd.s32 %s52, 1
      %p56 = scmp.eq.s32.totalorder %s18, 1
      %p57 = scmp.ne.s32.totalorder %s52, %s54
      %p58 = scmp.eq.s32.totalorder %s18, 0
      %p59 = por %p57, %p58
      %p60 = scmp.ne.s32.totalorder %s52, %s54
      %p61 = scmp.eq.s32.totalorder %s23, 1
      %p62 = por %p60, %p61
      %p63 = scmp.ne.s32.totalorder %s54, %s55
      %p64 = scmp.eq.s32.totalorder %s23, 0
      %p65 = por %p63, %p64
      %p66 = scmp.ne.s32.totalorder %s54, %s55
      %p67 = scmp.eq.s32.totalorder %s24, 1
      %p68 = por %p66, %p67
      %p70 = scmp.ne.s32.totalorder %s55, %s69
      %p71 = scmp.eq.s32.totalorder %s24, 0
      %p72 = por %p70, %p71
      %s74 = sadd.s32 %s73, 1
      %p77 = scmp.eq.s32.totalorder %s18, 1
      %p78 = scmp.ne.s32.totalorder %s73, %s75
      %p79 = scmp.eq.s32.totalorder %s18, 0
      %p80 = por %p78, %p79
      %p81 = scmp.ne.s32.totalorder %s73, %s75
      %p82 = scmp.eq.s32.totalorder %s23, 1
      %p83 = por %p81, %p82
      %p84 = scmp.ne.s32.totalorder %s75, %s76
      %p85 = scmp.eq.s32.totalorder %s23, 0
      %p86 = por %p84, %p85
      %p87 = scmp.ne.s32.totalorder %s75, %s76
      %p88 = scmp.eq.s32.totalorder %s24, 1
      %p89 = por %p87, %p88
      %p91 = scmp.ne.s32.totalorder %s76, %s90
      %p92 = scmp.eq.s32.totalorder %s24, 0
      %p93 = por %p91, %p92
      %s95 = sadd.s32 %s94, 1
      %p98 = scmp.eq.s32.totalorder %s18, 1
      %p99 = scmp.ne.s32.totalorder %s94, %s96
      %p100 = scmp.eq.s32.totalorder %s18, 0
      %p101 = por %p99, %p100
      %p102 = scmp.ne.s32.totalorder %s94, %s96
      %p103 = scmp.eq.s32.totalorder %s23, 1
      %p104 = por %p102, %p103
      %p105 = scmp.ne.s32.totalorder %s96, %s97
      %p106 = scmp.eq.s32.totalorder %s23, 0
      %p107 = por %p105, %p106
      %p108 = scmp.ne.s32.totalorder %s96, %s97
      %p109 = scmp.eq.s32.totalorder %s24, 1
      %p110 = por %p108, %p109
      %p112 = scmp.ne.s32.totalorder %s97, %s111
      %p113 = scmp.eq.s32.totalorder %s24, 0
      %p114 = por %p112, %p113
      %s116 = sadd.s32 %s115, 1
      %p119 = scmp.eq.s32.totalorder %s18, 1
      %p120 = scmp.ne.s32.totalorder %s115, %s117
      %p121 = scmp.eq.s32.totalorder %s18, 0
      %p122 = por %p120, %p121
      %p123 = scmp.ne.s32.totalorder %s115, %s117
      %p124 = scmp.eq.s32.totalorder %s23, 1
      %p125 = por %p123, %p124
      %p126 = scmp.ne.s32.totalorder %s117, %s118
      %p127 = scmp.eq.s32.totalorder %s23, 0
      %p128 = por %p126, %p127
      %p129 = scmp.ne.s32.totalorder %s117, %s118
      %p130 = scmp.eq.s32.totalorder %s24, 1
      %p131 = por %p129, %p130
      %p133 = scmp.ne.s32.totalorder %s118, %s132
      %p134 = scmp.eq.s32.totalorder %s24, 0
      %p135 = por %p133, %p134
      %s137 = sadd.s32 %s136, 1
      %p140 = scmp.eq.s32.totalorder %s18, 1
      %p141 = scmp.ne.s32.totalorder %s136, %s138
      %p142 = scmp.eq.s32.totalorder %s18, 0
      %p143 = por %p141, %p142
      %p144 = scmp.ne.s32.totalorder %s136, %s138
      %p145 = scmp.eq.s32.totalorder %s23, 1
      %p146 = por %p144, %p145
      %p147 = scmp.ne.s32.totalorder %s138, %s139
      %p148 = scmp.eq.s32.totalorder %s23, 0
      %p149 = por %p147, %p148
      %p150 = scmp.ne.s32.totalorder %s138, %s139
      %p151 = scmp.eq.s32.totalorder %s24, 1
      %p152 = por %p150, %p151
      %p154 = scmp.ne.s32.totalorder %s139, %s153
      %p155 = scmp.eq.s32.totalorder %s24, 0
      %p156 = por %p154, %p155
      %s158 = sadd.s32 %s157, 1
      %p161 = scmp.eq.s32.totalorder %s18, 1
      %p162 = scmp.ne.s32.totalorder %s157, %s159
      %p163 = scmp.eq.s32.totalorder %s18, 0
      %p164 = por %p162, %p163
      %p165 = scmp.ne.s32.totalorder %s157, %s159
      %p166 = scmp.eq.s32.totalorder %s23, 1
      %p167 = por %p165, %p166
      %p168 = scmp.ne.s32.totalorder %s159, %s160
      %p169 = scmp.eq.s32.totalorder %s23, 0
      %p170 = por %p168, %p169
      %p171 = scmp.ne.s32.totalorder %s159, %s160
      %p172 = scmp.eq.s32.totalorder %s24, 1
      %p173 = por %p171, %p172
      %p175 = scmp.ne.s32.totalorder %s160, %s174
      %p176 = scmp.eq.s32.totalorder %s24, 0
      %p177 = por %p175, %p176
      %s179 = sadd.s32 %s178, 1
      %p182 = scmp.eq.s32.totalorder %s18, 1
      %p183 = scmp.ne.s32.totalorder %s178, %s180
      %p184 = scmp.eq.s32.totalorder %s18, 0
      %p185 = por %p183, %p184
      %p186 = scmp.ne.s32.totalorder %s178, %s180
      %p187 = scmp.eq.s32.totalorder %s23, 1
      %p188 = por %p186, %p187
      %p189 = scmp.ne.s32.totalorder %s180, %s181
      %p190 = scmp.eq.s32.totalorder %s23, 0
      %p191 = por %p189, %p190
      %p192 = scmp.ne.s32.totalorder %s180, %s181
      %p193 = scmp.eq.s32.totalorder %s24, 1
      %p194 = por %p192, %p193
      %p196 = scmp.ne.s32.totalorder %s181, %s195
      %p197 = scmp.eq.s32.totalorder %s24, 0
      %p198 = por %p196, %p197
      %s200 = sadd.s32 %s199, 1
      %p203 = scmp.eq.s32.totalorder %s18, 1
      %p204 = scmp.ne.s32.totalorder %s199, %s201
      %p205 = scmp.eq.s32.totalorder %s18, 0
      %p206 = por %p204, %p205
      %p207 = scmp.ne.s32.totalorder %s199, %s201
      %p208 = scmp.eq.s32.totalorder %s23, 1
      %p209 = por %p207, %p208
      %p210 = scmp.ne.s32.totalorder %s201, %s202
      %p211 = scmp.eq.s32.totalorder %s23, 0
      %p212 = por %p210, %p211
      %p213 = scmp.ne.s32.totalorder %s201, %s202
      %p214 = scmp.eq.s32.totalorder %s24, 1
      %p215 = por %p213, %p214
      %p217 = scmp.ne.s32.totalorder %s202, %s216
      %p218 = scmp.eq.s32.totalorder %s24, 0
      %p219 = por %p217, %p218
      %s220 = ssub.s32 %s18, %s25
      %p221 = scmp.eq.s32.totalorder %s220, 0
      %s223 = sadd.s32 %s222, 1
      %s224 = scalar_select %p221, %s222, %s223
      %p227 = pneg %p221
      %p228 = scmp.eq.s32.totalorder %s18, 1
      %p229 = por %p227, %p228
      %p230 = scmp.ne.s32.totalorder %s222, %s225
      %p231 = scmp.eq.s32.totalorder %s18, 0
      %p232 = por %p230, %p231
      %p233 = scmp.ne.s32.totalorder %s222, %s225
      %p234 = scmp.eq.s32.totalorder %s23, 1
      %p235 = por %p233, %p234
      %p236 = scmp.ne.s32.totalorder %s225, %s226
      %p237 = scmp.eq.s32.totalorder %s23, 0
      %p238 = por %p236, %p237
      %p239 = scmp.ne.s32.totalorder %s225, %s226
      %p240 = scmp.eq.s32.totalorder %s24, 1
      %p241 = por %p239, %p240
      %p243 = scmp.ne.s32.totalorder %s226, %s242
      %p244 = scmp.eq.s32.totalorder %s24, 0
      %p245 = por %p243, %p244
      %p246 = scmp.le.s32.totalorder 1, %s18
      %p247 = scmp.lt.s32.totalorder %s18, 3
      %p248 = pnand %p246, %p247
      %p249 = pneg %p248
      // Predicated region
      $region9: #{tpu_custom_call.1} parent=5 // pred_check
        _
      $region10: #{tpu_custom_call.1} parent=5 // pred_check_branch
        %251 = sbr.rel (%p248) target = $region12
      $region11: #{tpu_custom_call.1} parent=5 // pred_region
        %s252 = ssub.s32 %s18, 1
        // Predicated region
        $region13: #{tpu_custom_call.1} parent=11 // pred_check
          %p253 = pneg %p65
        $region14: #{tpu_custom_call.1} parent=11 // pred_check_branch
          %255 = sbr.rel (%p253) target = $region16
        $region15: #{tpu_custom_call.1} parent=11 // pred_region
          _
        $region16: #{tpu_custom_call.1} parent=11 // pred_fallthru
          _
        // Predicated region
        $region17: #{tpu_custom_call.1} parent=11 // pred_check
          %p256 = pneg %p86
        $region18: #{tpu_custom_call.1} parent=11 // pred_check_branch
          %258 = sbr.rel (%p256) target = $region20
        $region19: #{tpu_custom_call.1} parent=11 // pred_region
          _
        $region20: #{tpu_custom_call.1} parent=11 // pred_fallthru
          _
        // Predicated region
        $region21: #{tpu_custom_call.1} parent=11 // pred_check
          %p259 = pneg %p107
        $region22: #{tpu_custom_call.1} parent=11 // pred_check_branch
          %261 = sbr.rel (%p259) target = $region24
        $region23: #{tpu_custom_call.1} parent=11 // pred_region
          _
        $region24: #{tpu_custom_call.1} parent=11 // pred_fallthru
          _
        // Predicated region
        $region25: #{tpu_custom_call.1} parent=11 // pred_check
          %p262 = pneg %p128
        $region26: #{tpu_custom_call.1} parent=11 // pred_check_branch
          %264 = sbr.rel (%p262) target = $region28
        $region27: #{tpu_custom_call.1} parent=11 // pred_region
          _
        $region28: #{tpu_custom_call.1} parent=11 // pred_fallthru
          _
        // Predicated region
        $region29: #{tpu_custom_call.1} parent=11 // pred_check
          %p265 = pneg %p149
        $region30: #{tpu_custom_call.1} parent=11 // pred_check_branch
          %267 = sbr.rel (%p265) target = $region32
        $region31: #{tpu_custom_call.1} parent=11 // pred_region
          _
        $region32: #{tpu_custom_call.1} parent=11 // pred_fallthru
          _
        // Predicated region
        $region33: #{tpu_custom_call.1} parent=11 // pred_check
          %p268 = pneg %p170
        $region34: #{tpu_custom_call.1} parent=11 // pred_check_branch
          %270 = sbr.rel (%p268) target = $region36
        $region35: #{tpu_custom_call.1} parent=11 // pred_region
          _
        $region36: #{tpu_custom_call.1} parent=11 // pred_fallthru
          _
        // Predicated region
        $region37: #{tpu_custom_call.1} parent=11 // pred_check
          %p271 = pneg %p191
        $region38: #{tpu_custom_call.1} parent=11 // pred_check_branch
          %273 = sbr.rel (%p271) target = $region40
        $region39: #{tpu_custom_call.1} parent=11 // pred_region
          _
        $region40: #{tpu_custom_call.1} parent=11 // pred_fallthru
          _
        // Predicated region
        $region41: #{tpu_custom_call.1} parent=11 // pred_check
          %p274 = pneg %p212
        $region42: #{tpu_custom_call.1} parent=11 // pred_check_branch
          %276 = sbr.rel (%p274) target = $region44
        $region43: #{tpu_custom_call.1} parent=11 // pred_region
          _
        $region44: #{tpu_custom_call.1} parent=11 // pred_fallthru
          _
      $region12: #{tpu_custom_call.1} parent=5 // pred_fallthru
        _
      %p277 = scmp.lt.s32.totalorder %s18, 2
      // Predicated region
      $region45: #{tpu_custom_call.1} parent=5 // pred_check
        %p278 = pneg %p277
      $region46: #{tpu_custom_call.1} parent=5 // pred_check_branch
        %280 = sbr.rel (%p278) target = $region48
      $region47: #{tpu_custom_call.1} parent=5 // pred_region
        // Predicated region
        $region49: #{tpu_custom_call.1} parent=47 // pred_check
          %p281 = pneg %p38
        $region50: #{tpu_custom_call.1} parent=47 // pred_check_branch
          %283 = sbr.rel (%p281) target = $region52
        $region51: #{tpu_custom_call.1} parent=47 // pred_region
          %p284 = scmp.lt.s32.totalorder %s18, 1
          %s285 = scalar_select %p284, %s18, 1
          %s286 = smul.addr %s285, 2
          %s287 = smul.addr %s286, 8
          %s288 = scalar_lea.vmem %s0, %s287
        $region52: #{tpu_custom_call.1} parent=47 // pred_fallthru
          _
      $region48: #{tpu_custom_call.1} parent=5 // pred_fallthru
        _
      %p289 = scmp.le.s32.totalorder 1, %s18
      %p290 = scmp.lt.s32.totalorder %s18, 3
      %p291 = pnand %p289, %p290
      %p292 = pneg %p291
      // Predicated region
      $region53: #{tpu_custom_call.1} parent=5 // pred_check
        _
      $region54: #{tpu_custom_call.1} parent=5 // pred_check_branch
        %294 = sbr.rel (%p291) target = $region56
      $region55: #{tpu_custom_call.1} parent=5 // pred_region
        %s295 = ssub.s32 %s18, 1
        %p296 = scmp.lt.s32.totalorder %s23, 1
        %s297 = scalar_select %p296, %s23, 1
        %s298 = smul.addr %s297, 2
        %s299 = smul.addr %s298, 8
        %s300 = scalar_lea.vmem %s0, %s299
        %p301 = pneg %p44
        %p302 = pneg %p41
        %p303 = pneg %p65
        %p304 = pneg %p62
        %p305 = pneg %p86
        %p306 = pneg %p83
        %p307 = pneg %p107
        %p308 = pneg %p104
        %p309 = pneg %p128
        %p310 = pneg %p125
        %p311 = pneg %p149
        %p312 = pneg %p146
        %p313 = pneg %p170
        %p314 = pneg %p167
        %p315 = pneg %p191
        %p316 = pneg %p188
        %p317 = pneg %p212
        %p318 = pneg %p209
        %p319 = pneg %p238
        %p320 = pneg %p235
        %s321 = sand.u32 %s225, 1
        %s322 = scalar_lea.sflag [#allocation3], %s321
        %s323 = sand.u32 %s225, 1
        %s324 = smul.addr %s323, 16
        %s325 = scalar_lea.vmem [#allocation2], %s324
        %p326 = scmp.lt.s32.totalorder %s23, 1
        %s327 = scalar_select %p326, %s23, 1
        %s328 = smul.addr %s327, 2
        %s329 = smul.addr %s328, 8
        %s330 = scalar_lea.vmem %s0, %s329
        %v331 = vld [vmem:[%s330] sm:$0xff]
        %v332 = vld [vmem:[%s330 + $0x8] sm:$0xff]
        %vm333 = vcmask 261120
        %v334 = vsel %vm333, %v331, 0.0
        %335 = vadd.xlane.f32.xlu0 %v334
        %v336 = vpop.xlane.xlu0 %335
        %v337 = vsel %vm333, %v332, 0.0
        %338 = vadd.xlane.f32.xlu0 %v337
        %v339 = vpop.xlane.xlu0 %338
        %v340 = vrcp.pop 32.0
        %v341 = vmul.f32 %v336, %v340
        %v342 = vmul.f32 %v339, %v340
        %v343 = vsub.f32 %v331, %v341
        %v344 = vsub.f32 %v332, %v342
        %v345 = vmul.f32 %v343, %v343
        %v346 = vmul.f32 %v344, %v344
        %v347 = vsel %vm333, %v345, 0.0
        %348 = vadd.xlane.f32.xlu0 %v347
        %v349 = vpop.xlane.xlu0 %348
        %v350 = vsel %vm333, %v346, 0.0
        %351 = vadd.xlane.f32.xlu0 %v350
        %v352 = vpop.xlane.xlu0 %351
        %v353 = vmul.f32 %v349, %v340
        %v354 = vmul.f32 %v352, %v340
        %v355 = vadd.f32 %v353, 1e-05
        %v356 = vadd.f32 %v354, 1e-05
        %v357 = vrsqrt.pop %v355
        %v358 = vrsqrt.pop %v356
        %v359 = vmul.f32 %v343, %v357
        %v360 = vmul.f32 %v344, %v358
        %v361 = vld [vmem:[%s1] sm:$0x1]
        %v363 = vlaneseq
        %v364 = vshrl.u32 %v363, 7
        %v365 = vsub.s32 0, %v364
        %v366 = vrot.slane %v361, %v365
        %v368 = vmul.f32 %v359, %v366
        %v369 = vmul.f32 %v360, %v366
        %v370 = vld [vmem:[%s2] sm:$0x1]
        %v372 = vlaneseq
        %v373 = vshrl.u32 %v372, 7
        %v374 = vsub.s32 0, %v373
        %v375 = vrot.slane %v370, %v374
        %v377 = vadd.f32 %v368, %v375
        %v378 = vadd.f32 %v369, %v375
        %v379 = vld [vmem:[%s3] sm:$0xff]
        %v380 = vld [vmem:[%s3 + $0x8] sm:$0xff]
        %v381 = vld [vmem:[%s3 + $0x10] sm:$0xff]
        %v382 = vld [vmem:[%s3 + $0x18] sm:$0xff]
        %v383 = vld [vmem:[%s4] sm:$0x1]
        %v385 = vlaneseq
        %v386 = vshrl.u32 %v385, 7
        %v387 = vsub.s32 0, %v386
        %v388 = vrot.slane %v383, %v387
        %v391 = vsel %vm333, %v377, 0
        %v394 = vsel %vm333, %v378, 0
        %396 = vmatprep.subr.mxu0 0.0
        %397 = vmatpush1.msra.mxu0 0.0
        %398 = vmatprep.subr.mxu0 0.0
        %399 = vmatpush1.msra.mxu0 0.0
        %400 = vmatprep.subr.mxu0 0.0
        %401 = vmatpush1.msra.mxu0 0.0
        %402 = vmatprep.subr.mxu0 0.0
        %403 = vmatpush1.msra.mxu0 0.0
        %404 = vmatprep.subr.mxu0 0.0
        %405 = vmatpush1.msra.mxu0 0.0
        %406 = vmatprep.subr.mxu0 0.0
        %407 = vmatpush1.msra.mxu0 0.0
        %408 = vmatprep.subr.mxu0 0.0
        %409 = vmatpush1.msra.mxu0 0.0
        %410 = vmatprep.subr.mxu0 0.0
        %411 = vmatpush1.msra.mxu0 0.0
        %412 = vmatprep.subr.mxu0 0.0
        %413 = vmatpush1.msra.mxu0 0.0
        %414 = vmatprep.subr.mxu0 0.0
        %415 = vmatpush1.msra.mxu0 0.0
        %416 = vmatprep.subr.mxu0 0.0
        %417 = vmatpush1.msra.mxu0 0.0
        %418 = vmatprep.subr.mxu0 0.0
        %419 = vmatpush1.msra.mxu0 0.0
        %420 = vmatprep.subr.mxu0 0.0
        %421 = vmatpush1.msra.mxu0 %v382
        %422 = vmatprep.subr.mxu0 0.0
        %423 = vmatpush1.msra.mxu0 %v381
        %424 = vmatprep.subr.mxu0 0.0
        %425 = vmatpush1.msra.mxu0 %v380
        %426 = vmatprep.subr.mxu0 0.0
        %427 = vmatpush1.msra.mxu0 %v379
        %428 = vmatprep.subr.mxu0 0.0
        %429 = vmatpush2.msra.mxu0 0.0
        %430 = vmatprep.subr.mxu0 0.0
        %431 = vmatpush2.msra.mxu0 0.0
        %432 = vmatprep.subr.mxu0 0.0
        %433 = vmatpush2.msra.mxu0 0.0
        %434 = vmatprep.subr.mxu0 0.0
        %435 = vmatpush2.msra.mxu0 0.0
        %436 = vmatprep.subr.mxu0 0.0
        %437 = vmatpush2.msra.mxu0 0.0
        %438 = vmatprep.subr.mxu0 0.0
        %439 = vmatpush2.msra.mxu0 0.0
        %440 = vmatprep.subr.mxu0 0.0
        %441 = vmatpush2.msra.mxu0 0.0
        %442 = vmatprep.subr.mxu0 0.0
        %443 = vmatpush2.msra.mxu0 0.0
        %444 = vmatprep.subr.mxu0 0.0
        %445 = vmatpush2.msra.mxu0 0.0
        %446 = vmatprep.subr.mxu0 0.0
        %447 = vmatpush2.msra.mxu0 0.0
        %448 = vmatprep.subr.mxu0 0.0
        %449 = vmatpush2.msra.mxu0 0.0
        %450 = vmatprep.subr.mxu0 0.0
        %451 = vmatpush2.msra.mxu0 0.0
        %452 = vmatprep.subr.mxu0 0.0
        %453 = vmatpush2.msra.mxu0 0.0
        %454 = vmatprep.subr.mxu0 0.0
        %455 = vmatpush2.msra.mxu0 0.0
        %456 = vmatprep.subr.mxu0 0.0
        %457 = vmatpush2.msra.mxu0 0.0
        %458 = vmatprep.subr.mxu0 0.0
        %459 = vmatpush2.msra.mxu0 0.0
        %460 = vmatprep.mubr.f32.mxu0 0.0
        %461 = vmatmul.mubr.f32.gmra.mxu0 %v391
        %v462 = vpop.f32.mrf.mxu0
        %v463 = vadd.f32 %v388, %v462
        %v464 = vpop.f32.mrf.mxu0
        %465 = vmatprep.mubr.f32.mxu0 0.0
        %466 = vmatmul.mubr.f32.gmra.mxu0 %v394
        %v467 = vpop.f32.mrf.mxu0
        %v468 = vadd.f32 %v388, %v467
        %v469 = vpop.f32.mrf.mxu0
        %470 = vdwg.mxu0
        %v471 = vxor.u32 %v463, 2147483648
        %v472 = vxor.u32 %v468, 2147483648
        %v473 = vmul.f32 %v471, 1.442695
        %v474 = vpow.pop %v473
        %v475 = vmul.f32 %v472, 1.442695
        %v476 = vpow.pop %v475
        %v477 = vadd.f32 %v474, 1.0
        %v478 = vadd.f32 %v476, 1.0
        %v479 = vrcp.pop %v477
        %v480 = vmul.f32 1.0, %v479
        %v481 = vrcp.pop %v478
        %v482 = vmul.f32 1.0, %v481
        %v483 = vld [vmem:[%s5] sm:$0x7]
        %vm486 = vcmask 1040384
        %v487 = vrot.slane %v463, 7
        %v488 = vrot.slane %v468, 7
        %v489 = vsel %vm486, %v487, %v488
        %v493 = vsel %vm486, 0.0, %v487
        %v494 = vsel %vm486, %v488, 0.0
        %v495 = vlaneseq
        %v496 = vshrl.u32 %v495, 7
        %v497 = vsub.s32 0, %v496
        %v498 = vrot.slane %v483, %v497
        %v499 = vmul.f32 %v493, %v498
        %v500 = vmul.f32 %v489, %v498
        %v501 = vadd.f32 %v499, 0.0
        %v502 = vadd.f32 %v500, 0.0
        %v503 = vlaneseq
        %v504 = vshrl.u32 %v503, 7
        %v505 = vsub.s32 1, %v504
        %v506 = vrot.slane %v483, %v505
        %v507 = vmul.f32 %v493, %v506
        %v508 = vmul.f32 %v489, %v506
        %v509 = vmul.f32 %v494, %v506
        %vm513 = vcmask 1046528
        %v514 = vrot.slane %v507, 1
        %v515 = vrot.slane %v508, 1
        %v516 = vsel %vm513, %v514, %v515
        %v517 = vrot.slane %v509, 1
        %v518 = vsel %vm513, %v515, %v517
        %v521 = vadd.f32 %v501, %v516
        %v522 = vadd.f32 %v502, %v518
        %v523 = vlaneseq
        %v524 = vshrl.u32 %v523, 7
        %v525 = vsub.s32 2, %v524
        %v526 = vrot.slane %v483, %v525
        %v527 = vmul.f32 %v493, %v526
        %v528 = vmul.f32 %v489, %v526
        %v529 = vmul.f32 %v494, %v526
        %vm533 = vcmask 1045504
        %v534 = vrot.slane %v527, 2
        %v535 = vrot.slane %v528, 2
        %v536 = vsel %vm533, %v534, %v535
        %v537 = vrot.slane %v529, 2
        %v538 = vsel %vm533, %v535, %v537
        %v541 = vadd.f32 %v521, %v536
        %v542 = vadd.f32 %v522, %v538
        %v543 = vld [vmem:[%s6] sm:$0x1]
        %v545 = vlaneseq
        %v546 = vshrl.u32 %v545, 7
        %v547 = vsub.s32 0, %v546
        %v548 = vrot.slane %v543, %v547
        %v550 = vadd.f32 %v541, %v548
        %v551 = vadd.f32 %v542, %v548
        %554 = vrot.lane.b32.xlu0 %v480, 64
        %v555 = vpop.permute.xlu0 %554
        %556 = vrot.lane.b32.xlu0 %v482, 64
        %v557 = vpop.permute.xlu0 %556
        %v560 = vmul.f32 %v550, %v555
        %v561 = vmul.f32 %v551, %v557
        %v562 = vld [vmem:[%s7] sm:$0xff]
        %v563 = vld [vmem:[%s7 + $0x8] sm:$0xff]
        %v564 = vld [vmem:[%s7 + $0x10] sm:$0xff]
        %v565 = vld [vmem:[%s7 + $0x18] sm:$0xff]
        %v566 = vld [vmem:[%s7 + $0x20] sm:$0xff]
        %v567 = vld [vmem:[%s7 + $0x28] sm:$0xff]
        %v568 = vld [vmem:[%s7 + $0x30] sm:$0xff]
        %v569 = vld [vmem:[%s7 + $0x38] sm:$0xff]
        %v570 = vld [vmem:[%s8] sm:$0x1]
        %v572 = vlaneseq
        %v573 = vshrl.u32 %v572, 7
        %v574 = vsub.s32 0, %v573
        %v575 = vrot.slane %v570, %v574
        %vm577 = vcmask 523264
        %v579 = vsel %vm577, %v560, 0
        %v582 = vsel %vm577, %v561, 0
        %584 = vmatprep.subr.mxu0 0.0
        %585 = vmatpush1.msra.mxu0 0.0
        %586 = vmatprep.subr.mxu0 0.0
        %587 = vmatpush1.msra.mxu0 0.0
        %588 = vmatprep.subr.mxu0 0.0
        %589 = vmatpush1.msra.mxu0 0.0
        %590 = vmatprep.subr.mxu0 0.0
        %591 = vmatpush1.msra.mxu0 0.0
        %592 = vmatprep.subr.mxu0 0.0
        %593 = vmatpush1.msra.mxu0 0.0
        %594 = vmatprep.subr.mxu0 0.0
        %595 = vmatpush1.msra.mxu0 0.0
        %596 = vmatprep.subr.mxu0 0.0
        %597 = vmatpush1.msra.mxu0 0.0
        %598 = vmatprep.subr.mxu0 0.0
        %599 = vmatpush1.msra.mxu0 0.0
        %600 = vmatprep.subr.mxu0 0.0
        %601 = vmatpush1.msra.mxu0 %v569
        %602 = vmatprep.subr.mxu0 0.0
        %603 = vmatpush1.msra.mxu0 %v568
        %604 = vmatprep.subr.mxu0 0.0
        %605 = vmatpush1.msra.mxu0 %v567
        %606 = vmatprep.subr.mxu0 0.0
        %607 = vmatpush1.msra.mxu0 %v566
        %608 = vmatprep.subr.mxu0 0.0
        %609 = vmatpush1.msra.mxu0 %v565
        %610 = vmatprep.subr.mxu0 0.0
        %611 = vmatpush1.msra.mxu0 %v564
        %612 = vmatprep.subr.mxu0 0.0
        %613 = vmatpush1.msra.mxu0 %v563
        %614 = vmatprep.subr.mxu0 0.0
        %615 = vmatpush1.msra.mxu0 %v562
        %616 = vmatprep.subr.mxu0 0.0
        %617 = vmatpush2.msra.mxu0 0.0
        %618 = vmatprep.subr.mxu0 0.0
        %619 = vmatpush2.msra.mxu0 0.0
        %620 = vmatprep.subr.mxu0 0.0
        %621 = vmatpush2.msra.mxu0 0.0
        %622 = vmatprep.subr.mxu0 0.0
        %623 = vmatpush2.msra.mxu0 0.0
        %624 = vmatprep.subr.mxu0 0.0
        %625 = vmatpush2.msra.mxu0 0.0
        %626 = vmatprep.subr.mxu0 0.0
        %627 = vmatpush2.msra.mxu0 0.0
        %628 = vmatprep.subr.mxu0 0.0
        %629 = vmatpush2.msra.mxu0 0.0
        %630 = vmatprep.subr.mxu0 0.0
        %631 = vmatpush2.msra.mxu0 0.0
        %632 = vmatprep.subr.mxu0 0.0
        %633 = vmatpush2.msra.mxu0 0.0
        %634 = vmatprep.subr.mxu0 0.0
        %635 = vmatpush2.msra.mxu0 0.0
        %636 = vmatprep.subr.mxu0 0.0
        %637 = vmatpush2.msra.mxu0 0.0
        %638 = vmatprep.subr.mxu0 0.0
        %639 = vmatpush2.msra.mxu0 0.0
        %640 = vmatprep.subr.mxu0 0.0
        %641 = vmatpush2.msra.mxu0 0.0
        %642 = vmatprep.subr.mxu0 0.0
        %643 = vmatpush2.msra.mxu0 0.0
        %644 = vmatprep.subr.mxu0 0.0
        %645 = vmatpush2.msra.mxu0 0.0
        %646 = vmatprep.subr.mxu0 0.0
        %647 = vmatpush2.msra.mxu0 0.0
        %648 = vmatprep.mubr.f32.mxu0 0.0
        %649 = vmatmul.mubr.f32.gmra.mxu0 %v579
        %v650 = vpop.f32.mrf.mxu0
        %v651 = vadd.f32 %v575, %v650
        %v652 = vpop.f32.mrf.mxu0
        %653 = vmatprep.mubr.f32.mxu0 0.0
        %654 = vmatmul.mubr.f32.gmra.mxu0 %v582
        %v655 = vpop.f32.mrf.mxu0
        %v656 = vadd.f32 %v575, %v655
        %v657 = vpop.f32.mrf.mxu0
        %658 = vdwg.mxu0
        %v659 = vadd.f32 %v651, %v331
        %v660 = vadd.f32 %v656, %v332
        %661 = vst.msk [vmem:[%s325] sm:$0xff] %vm333, %v659
        %662 = vst.msk [vmem:[%s325 + $0x8] sm:$0xff] %vm333, %v660
        %s663 = sand.u32 %s225, 1
        %s664 = scalar_lea.sflag [#allocation3], %s663
        %s665 = sand.u32 %s225, 1
        %s666 = smul.addr %s665, 16
        %s667 = scalar_lea.vmem [#allocation2], %s666
        // Predicated region
        $region57: #{tpu_custom_call.1} parent=55 // pred_check
          %p668 = pneg %p235
        $region58: #{tpu_custom_call.1} parent=55 // pred_check_branch
          %670 = sbr.rel (%p668) target = $region60
        $region59: #{tpu_custom_call.1} parent=55 // pred_region
          %s672 = ssub.s32 256, 256
          %673 = vsyncadd %s664, %s672
          %s674 = smul.addr %s23, 2
          %s675 = smul.addr %s674, 128
          %s676 = scalar_lea.hbm %s9, %s675
          %s677 = sshll.u32 %s667, 4
          %s678 = int_to_ptr.vmem [resolvable:$true] %s677
          %683 = dma.vmem_to_hbm [thread:$0]  %s678, 256, %s676, %s664, 128, 128, 8
        $region60: #{tpu_custom_call.1} parent=55 // pred_fallthru
          _
      $region56: #{tpu_custom_call.1} parent=5 // pred_fallthru
        _
      %p684 = scmp.le.s32.totalorder 2, %s18
      // Predicated region
      $region61: #{tpu_custom_call.1} parent=5 // pred_check
        %p685 = pneg %p684
      $region62: #{tpu_custom_call.1} parent=5 // pred_check_branch
        %687 = sbr.rel (%p685) target = $region64
      $region63: #{tpu_custom_call.1} parent=5 // pred_region
        %s688 = ssub.s32 %s18, 2
        // Predicated region
        $region65: #{tpu_custom_call.1} parent=63 // pred_check
          %p689 = pneg %p241
        $region66: #{tpu_custom_call.1} parent=63 // pred_check_branch
          %691 = sbr.rel (%p689) target = $region68
        $region67: #{tpu_custom_call.1} parent=63 // pred_region
          %s692 = sand.u32 %s226, 1
          %s693 = scalar_lea.sflag [#allocation3], %s692
          %s694 = sand.u32 %s226, 1
          %s695 = smul.addr %s694, 16
          %s696 = scalar_lea.vmem [#allocation2], %s695
          %697 = dma.done %s693, 256
        $region68: #{tpu_custom_call.1} parent=63 // pred_fallthru
          _
      $region64: #{tpu_custom_call.1} parent=5 // pred_fallthru
        _
    $region6: #{tpu_custom_call.1} parent=1 // loop_footer
      %s22 = sadd.s32 1, %s18
    $region7: #{tpu_custom_call.1} parent=1 // loop_footer_branch
      %17 = sbr.rel target = $region3
    $region8: #{tpu_custom_call.1} parent=1 // loop_exit
      _
    %698 = vsyncpa [#allocation3], 1
    %s699 = scalar_lea.sflag [#allocation3], 1
    %700 = vsyncpa %s699, 1

</llo_original>
